<compile_context>
chip_gen: v6e
topology: v6e:2x2x1
jax: 0.10.0
libtpu: 0.0.40
codegen_flags: <defaults>
</compile_context>

<pallas_src>
import functools

import jax
import jax.numpy as jnp
from jax.experimental import pallas as pl
from jax.experimental.pallas import tpu as pltpu


def _round_up(a, b):
    return (a + b - 1) // b * b


def _allap_mean_kernel(x_ref, o_ref):
    # Documented path (L == width): plain mean over the pooling (sublane) axis.
    # x_ref: (TB, L, W) -> o_ref: (TB, W).
    x = x_ref[...].astype(jnp.float32)          # f32 temp counted in VMEM budget
    o_ref[...] = jnp.mean(x, axis=1).astype(o_ref.dtype)


def _allap_window_kernel(x_ref, o_ref, *, width, lout):
    # General sliding window (window=width, stride=1) along the L axis.
    # x_ref: (TB, L, W) -> o_ref: (TB, lout, W).
    # Binary-doubling window sum: O(log2(width)) shifted adds instead of
    # `width` taps, so XLU/VALU work stays well under the HBM stream.
    x = x_ref[...].astype(jnp.float32)          # f32 temp counted in VMEM budget
    blk, cur = x, 1                 # invariant: blk[:, i, :] = sum_{t<cur} x[:, i+t, :]
    acc, off, rem = None, 0, width
    while rem:
        if rem & 1:
            piece = blk[:, off:off + lout, :]
            acc = piece if acc is None else acc + piece
            off += cur
        rem >>= 1
        if rem:
            nv = blk.shape[1] - cur
            blk = blk[:, :nv, :] + blk[:, cur:cur + nv, :]
            cur *= 2
    o_ref[...] = (acc * (1.0 / float(width))).astype(o_ref.dtype)


def _pick_batch_tile(B, L, W, lout, itemsize, max_batch_tile=None):
    """Batch-tile size TB and grid length, sized against real VMEM usage."""
    lp = _round_up(L, 8)            # sublane padding of the input slab
    lop = _round_up(lout, 8)
    wp = _round_up(W, 128)          # lane padding
    per_row = (2 * lp * wp * itemsize       # double-buffered input tile (x dtype)
               + 2 * lop * wp * itemsize    # double-buffered output tile (x dtype)
               + 2 * lp * wp * 4            # in-kernel f32 tile + doubling temp
               + 2 * lop * wp * 4)          # f32 window accumulator + result
    budget = 20 * 1024 * 1024               # stays under every gen's 32 MiB scoped VMEM
    tb = max(8, (budget // per_row) // 8 * 8)

    # Multi-TensorCore parts: "parallel" shards the grid across cores, so keep
    # >= 4 steps (2 per core) when the batch allows.  On 1-TC v5e/v6e the
    # single largest tile is best, so no forced split there.
    min_steps = 1
    try:
        if "v7" in jax.devices()[0].device_kind.lower():
            min_steps = 4
    except Exception:
        pass
    if min_steps > 1 and B >= min_steps * 8:
        tb = min(tb, max(8, (B // min_steps) // 8 * 8))

    if max_batch_tile is not None:
        tb = min(tb, max(8, (max_batch_tile // 8) * 8))

    if B <= tb:
        return B, 1                 # single full-extent block (also covers B < 8)
    tb = min(tb, (B // 8) * 8)      # keep TB a multiple of 8 (sublane rule)
    return tb, pl.cdiv(B, tb)


def allap(x, width, *, use_pallas=None, max_batch_tile=None):
    """Pallas equivalent of AllAP(width).forward(x); x: (B, 1, L, W)."""
    B, C, L, W = x.shape
    if C != 1:
        raise ValueError("AllAP expects a single channel (conv output)")
    if not 1 <= width <= L:
        raise ValueError("pooling window must fit in the length dimension")
    lout = L - width + 1

    if use_pallas is None:
        # Tiny tensors: fixed pallas_call overhead dominates; plain XLA wins.
        use_pallas = x.size >= (1 << 14)
    if not use_pallas:
        win = jnp.stack([x[:, 0, k:k + lout, :].astype(jnp.float32)
                         for k in range(width)], axis=0)
        out = jnp.mean(win, axis=0).astype(x.dtype)
        return out[:, 0, :] if lout == 1 else out

    tb, grid_b = _pick_batch_tile(B, L, W, lout, jnp.dtype(x.dtype).itemsize,
                                  max_batch_tile)

    # Native-layout input block: channel dim squeezed, full (L, W) extent.
    in_spec = pl.BlockSpec((tb, None, L, W), lambda i: (i, 0, 0, 0))
    if lout == 1:
        kernel = _allap_mean_kernel
        out_shape = jax.ShapeDtypeStruct((B, W), x.dtype)       # torch's (B, W)
        out_spec = pl.BlockSpec((tb, W), lambda i: (i, 0))
    else:
        kernel = functools.partial(_allap_window_kernel, width=width, lout=lout)
        out_shape = jax.ShapeDtypeStruct((B, lout, W), x.dtype)  # torch's (B, lout, W)
        out_spec = pl.BlockSpec((tb, lout, W), lambda i: (i, 0, 0))

    return pl.pallas_call(
        kernel,
        out_shape=out_shape,
        grid_spec=pltpu.PrefetchScalarGridSpec(
            num_scalar_prefetch=0,
            grid=(grid_b,),
            in_specs=[in_spec],
            out_specs=out_spec,
        ),
        compiler_params=pltpu.CompilerParams(
            # Batch tiles are independent; on multi-TC chips "parallel" lets
            # Mosaic shard the grid across TensorCores.  (CORE_PARALLEL is
            # deliberately not used for portability across generations.)
            dimension_semantics=("parallel",),
            vmem_limit_bytes=32 * 1024 * 1024,  # raises v5e's 16 MiB default,
                                                # still the default cap on v7x
        ),
    )(x)


if __name__ == "__main__":
    def reference(x, width):
        lout = x.shape[2] - width + 1
        win = jnp.stack([x[:, 0, k:k + lout, :].astype(jnp.float32)
                         for k in range(width)], axis=0)
        out = jnp.mean(win, axis=0)
        return out[:, 0, :] if lout == 1 else out

    key = jax.random.PRNGKey(0)

    # 1) Documented use: (batch, 1, length, width) with length == width -> (batch, width).
    batch, length, width = 2, 16, 16
    x = jax.random.normal(key, (batch, 1, length, width), dtype=jnp.float32)
    out = jax.block_until_ready(allap(x, width, use_pallas=True))
    assert out.shape == (batch, width), out.shape
    assert jnp.allclose(out, reference(x, width), atol=1e-5, rtol=1e-5)

    # Auto-dispatch fast path for the same tiny shape (XLA, no Pallas).
    out_fast = jax.block_until_ready(allap(x, width))
    assert jnp.allclose(out_fast, reference(x, width), atol=1e-5, rtol=1e-5)

    # 2) General sliding-window path (length > width) -> (batch, lout, width).
    b2, l2, w2, win2 = 2, 20, 16, 8
    x2 = jax.random.normal(jax.random.PRNGKey(1), (b2, 1, l2, w2), jnp.float32)
    out2 = jax.block_until_ready(allap(x2, win2, use_pallas=True))
    assert out2.shape == (b2, l2 - win2 + 1, w2), out2.shape
    assert jnp.allclose(out2, reference(x2, win2), atol=1e-5, rtol=1e-5)

    # 3) Multi-step batch grid (3 tiles of 8) in bf16, exercising pipelining.
    b3, l3, w3, win3 = 24, 16, 16, 16
    x3 = jax.random.normal(jax.random.PRNGKey(2), (b3, 1, l3, w3), jnp.bfloat16)
    out3 = jax.block_until_ready(allap(x3, win3, use_pallas=True, max_batch_tile=8))
    assert out3.shape == (b3, w3), out3.shape
    assert jnp.allclose(out3.astype(jnp.float32), reference(x3.astype(jnp.float32), win3),
                        atol=2e-2, rtol=2e-2)

    print("KERNEL_OK")
</pallas_src>

<mosaic_0001>
module attributes {stable_mosaic.version = 11 : i64} {
  func.func @_allap_mean_kernel(%arg0: i32, %arg1: memref<2x1x16x16xf32, #tpu.memory_space<vmem>>, %arg2: memref<2x16xf32, #tpu.memory_space<vmem>>) attributes {dimension_semantics = [#tpu.dimension_semantics<parallel>], iteration_bounds = array<i64: 1>, scalar_prefetch = 0 : i64, scratch_operands = 0 : i64, tpu.core_type = #tpu.core_type<tc>, window_params = [{transform_indices = @transform_0, window_bounds = array<i64: 2, 1, 16, 16>}, {transform_indices = @transform_1, window_bounds = array<i64: 2, 16>}]} {
    %c0 = arith.constant 0 : index
    %c0_0 = arith.constant 0 : index
    %c0_1 = arith.constant 0 : index
    %c0_2 = arith.constant 0 : index
    %0 = vector.load %arg1[%c0, %c0_0, %c0_1, %c0_2] : memref<2x1x16x16xf32, #tpu.memory_space<vmem>>, vector<2x1x16x16xf32>
    %1 = vector.shape_cast %0 : vector<2x1x16x16xf32> to vector<2x16x16xf32>
    %cst = arith.constant dense<0.000000e+00> : vector<2x16xf32>
    %2 = vector.multi_reduction <add>, %1, %cst [1] : vector<2x16x16xf32> to vector<2x16xf32>
    %cst_3 = arith.constant 1.600000e+01 : f32
    %3 = vector.broadcast %cst_3 : f32 to vector<2x16xf32>
    %4 = arith.divf %2, %3 : vector<2x16xf32>
    %c0_4 = arith.constant 0 : index
    %c0_5 = arith.constant 0 : index
    %5 = vector.load %arg2[%c0_4, %c0_5] : memref<2x16xf32, #tpu.memory_space<vmem>>, vector<2x16xf32>
    tpu.vector_store %arg2[%c0_4, %c0_5], %4 {strides = array<i32>} : memref<2x16xf32, #tpu.memory_space<vmem>>, vector<2x16xf32>,
    return
  }
  func.func @transform_0(%arg0: i32) -> (i32, i32, i32, i32) {
    %c0_i32 = arith.constant 0 : i32
    %c0_i32_0 = arith.constant 0 : i32
    %c0_i32_1 = arith.constant 0 : i32
    %c0_i32_2 = arith.constant 0 : i32
    return %arg0, %c0_i32, %c0_i32_0, %c0_i32_1 : i32, i32, i32, i32
  }
  func.func @transform_1(%arg0: i32) -> (i32, i32) {
    %c0_i32 = arith.constant 0 : i32
    %c0_i32_0 = arith.constant 0 : i32
    return %arg0, %c0_i32 : i32, i32
  }
}

</mosaic_0001>

<llo_original>
// kernel: tpu_custom_call.1
$region0: #{tpu_custom_call.1}
  #allocation0 [shape = 'u32[]', space=smem, size = 0x4, offset = 0x4, fixed_abs, tag = 'smem constant byte address 0x4 - core index']
  #allocation1 [shape = 'u32[144,128]{1,0:T(1,128)}', space=vmem, size = 0x12000, scoped, tag = 'internal scratch']
  %s0 = inlined_call_operand.hbm [shape: f32[2,1,16,16], index: 0, kind: input, shape index: {}]
  %s1 = inlined_call_operand.hbm [shape: f32[2,16], index: 1, kind: output, shape index: {}]
  %s2 = sld [smem:[#allocation0]]
  $region18: #{tpu_custom_call.1} parent=0
    _
  %s4 = ssub.s32 1, %s2
  %s5 = scalar_select 0, %s4, %s2
  $region1: #{tpu_custom_call.1} parent=0
    #allocation2 [shape = 'u8[16384]{0}', space=vmem, size = 0x4000, scoped, tag = 'input window, operand 0, single buffered']
    #allocation3 [shape = 's32[1]{0}', space=sflag, size = 0x4, scoped, tag = 'scoped memory for tpu_custom_call.1']
    #allocation4 [shape = 's32[1]{0}', space=sflag, size = 0x4, scoped, tag = 'scoped memory for tpu_custom_call.1']
    #allocation5 [shape = 'u8[1024]{0}', space=vmem, size = 0x400, scoped, tag = 'output window, operand 0, single buffered']
    %6 = vsyncpa [#allocation3], 0
    %7 = vsyncpa [#allocation4], 0
    // Predicated region
    $region2: #{tpu_custom_call.1} parent=1 // pred_check
      _
    $region3: #{tpu_custom_call.1} parent=1 // pred_check_branch
      %9 = sbr.rel (0) target = $region5
    $region4: #{tpu_custom_call.1} parent=1 // pred_region
      %s11 = ssub.s32 512, 512
      %12 = vsyncadd [#allocation3], %s11
      %s13 = sshll.u32 [#allocation2], 4
      %s14 = int_to_ptr.vmem [resolvable:$true] %s13
      %19 = dma.hbm_to_vmem [thread:$0]  %s0, 512, %s14, [#allocation3], 128, 128, 8
    $region5: #{tpu_custom_call.1} parent=1 // pred_fallthru
      _
    // Predicated region
    $region6: #{tpu_custom_call.1} parent=1 // pred_check
      _
    $region7: #{tpu_custom_call.1} parent=1 // pred_check_branch
      %21 = sbr.rel (0) target = $region9
    $region8: #{tpu_custom_call.1} parent=1 // pred_region
      %22 = dma.done [#allocation3], 512
    $region9: #{tpu_custom_call.1} parent=1 // pred_fallthru
      _
    %v23 = vld [vmem:[#allocation2] sm:$0xff]
    %v24 = vld [vmem:[#allocation2 + $0x8] sm:$0xff]
    %v25 = vld [vmem:[#allocation2 + $0x10] sm:$0xff]
    %v26 = vld [vmem:[#allocation2 + $0x18] sm:$0xff]
    %vm27 = vcmask 130048
    %v28 = vsel %vm27, %v23, 0.0
    %v29 = vsel %vm27, %v24, 0.0
    %v30 = vadd.f32 %v28, %v29
    %v31 = vrot.slane %v30, 4
    %v32 = vadd.f32 %v30, %v31
    %v33 = vrot.slane %v32, 2
    %v34 = vadd.f32 %v32, %v33
    %v35 = vrot.slane %v34, 1
    %v36 = vadd.f32 %v34, %v35
    %v37 = vsel %vm27, %v25, 0.0
    %v38 = vsel %vm27, %v26, 0.0
    %v39 = vadd.f32 %v37, %v38
    %v40 = vrot.slane %v39, 4
    %v41 = vadd.f32 %v39, %v40
    %v42 = vrot.slane %v41, 2
    %v43 = vadd.f32 %v41, %v42
    %v44 = vrot.slane %v43, 1
    %v45 = vadd.f32 %v43, %v44
    %v46 = vrcp.pop 16.0
    %v47 = vmul.f32 %v36, %v46
    %v48 = vmul.f32 %v45, %v46
    %vm51 = vcmask 1041409
    %v52 = vsel %vm51, %v48, %v47
    %vm54 = vcmask 123904
    %55 = vst.msk [vmem:[#allocation5] sm:$0x3] %vm54, %v52
    // Predicated region
    $region10: #{tpu_custom_call.1} parent=1 // pred_check
      _
    $region11: #{tpu_custom_call.1} parent=1 // pred_check_branch
      %57 = sbr.rel (0) target = $region13
    $region12: #{tpu_custom_call.1} parent=1 // pred_region
      %s59 = ssub.s32 32, 32
      %60 = vsyncadd [#allocation4], %s59
      %s62 = sshll.u32 [#allocation5], 4
      %s63 = int_to_ptr.vmem [resolvable:$true] %s62
      %65 = dma.vmem_to_hbm [thread:$0]  %s63, 32, %s1, [#allocation4]
    $region13: #{tpu_custom_call.1} parent=1 // pred_fallthru
      _
    // Predicated region
    $region14: #{tpu_custom_call.1} parent=1 // pred_check
      _
    $region15: #{tpu_custom_call.1} parent=1 // pred_check_branch
      %67 = sbr.rel (0) target = $region17
    $region16: #{tpu_custom_call.1} parent=1 // pred_region
      %68 = dma.done [#allocation4], 32
    $region17: #{tpu_custom_call.1} parent=1 // pred_fallthru
      _
    %69 = vsyncpa [#allocation3], 1
    %70 = vsyncpa [#allocation4], 1

</llo_original>
